<compile_context>
chip_gen: v6e
topology: v6e:2x2x1
jax: 0.10.0
libtpu: 0.0.40
codegen_flags: <defaults>
</compile_context>

<pallas_src>
import functools

import jax
import jax.numpy as jnp
import numpy as np
from jax.experimental import pallas as pl
from jax.experimental.pallas import tpu as pltpu


# ----------------------------------------------------------------------------
# Helpers
# ----------------------------------------------------------------------------
def _round_up(x, m):
    return int(pl.cdiv(x, m)) * m


@functools.lru_cache(maxsize=1)
def _vmem_limit_bytes():
    """Per-generation VMEM budget: ~half of physical capacity (64 MiB on
    v5e/v6e's 128 MiB, 32 MiB on v7x's 64 MiB) so double buffers + compiler
    internals never push tile choices into spills."""
    try:
        cap = int(pltpu.get_tpu_info().vmem_capacity_bytes)
        return max(32 * 1024 * 1024, min(cap // 2, 96 * 1024 * 1024))
    except Exception:  # off-TPU / API mismatch: conservative, safe everywhere
        return 32 * 1024 * 1024


def _resident_spec(block_shape):
    """BlockSpec for a grid-invariant operand: constant index map + a single
    VMEM buffer (double-buffering a block whose index never changes is wasted
    VMEM)."""
    zeros = (0,) * len(block_shape)
    index_map = lambda b: zeros
    try:
        return pl.BlockSpec(block_shape, index_map, pipeline_mode=pl.Buffered(1))
    except TypeError:  # jax without BlockSpec.pipeline_mode: default buffering
        return pl.BlockSpec(block_shape, index_map)


# ----------------------------------------------------------------------------
# M/N/K-tiled linear kernel (initial / final transforms)
# ----------------------------------------------------------------------------
def _linear_kernel(x_ref, w_ref, b_ref, o_ref, acc_ref, *, relu):
    """One (row-tile, col-tile, k-tile) step of y = x @ w + b (+ ReLU).

    bf16 operands, f32 MXU accumulation into a VMEM scratch; bias / ReLU /
    store happen on the last K step (pl.when init/finalize pattern)."""
    k_idx = pl.program_id(2)

    @pl.when(k_idx == 0)
    def _init():
        acc_ref[...] = jnp.zeros_like(acc_ref)

    acc_ref[...] += jnp.dot(x_ref[...], w_ref[...],
                            preferred_element_type=jnp.float32)

    @pl.when(k_idx == pl.num_programs(2) - 1)
    def _finalize():
        y = acc_ref[...] + b_ref[...]
        if relu:
            y = jnp.maximum(y, 0.0)
        o_ref[...] = y.astype(o_ref.dtype)


def linear_pallas(x2d, w, b, *, relu, out_dtype, tile_m=512, tile_n=512,
                  tile_k=512):
    """y = x @ w + b with lane-dense (128-multiple) output tiles.

    tile_m=512 targets the measured ~85%-of-roofline block size on v5e/v6e;
    the per-tile working set stays well inside the v7x budget from
    _vmem_limit_bytes().  K is a grid axis with an f32 accumulator so the full
    weight never has to be VMEM-resident."""
    M, Din = x2d.shape
    Dout = w.shape[1]

    x2d = x2d.astype(jnp.bfloat16)
    w = w.astype(jnp.bfloat16)
    b = b.astype(jnp.float32)

    tn = min(tile_n, _round_up(Dout, 128))      # lane-dense output tiles
    Dout_p = _round_up(Dout, tn)
    tk = min(tile_k, _round_up(Din, 128))
    Din_p = _round_up(Din, tk)
    tm = min(tile_m, _round_up(M, 8))
    M_p = _round_up(M, tm)

    if (M_p, Din_p) != (M, Din):
        x2d = jnp.pad(x2d, ((0, M_p - M), (0, Din_p - Din)))
    if (Din_p, Dout_p) != (Din, Dout):
        w = jnp.pad(w, ((0, Din_p - Din), (0, Dout_p - Dout)))
    if Dout_p != Dout:
        b = jnp.pad(b, ((0, Dout_p - Dout),))
    b2d = b.reshape(1, Dout_p)

    out = pl.pallas_call(
        functools.partial(_linear_kernel, relu=relu),
        grid=(M_p // tm, Dout_p // tn, Din_p // tk),
        in_specs=[
            pl.BlockSpec((tm, tk), lambda i, j, k: (i, k)),
            pl.BlockSpec((tk, tn), lambda i, j, k: (k, j)),
            pl.BlockSpec((1, tn), lambda i, j, k: (0, j)),
        ],
        out_specs=pl.BlockSpec((tm, tn), lambda i, j, k: (i, j)),
        out_shape=jax.ShapeDtypeStruct((M_p, Dout_p), out_dtype),
        scratch_shapes=[pltpu.VMEM((tm, tn), jnp.float32)],
        compiler_params=pltpu.CompilerParams(
            dimension_semantics=("parallel", "parallel", "arbitrary"),
            vmem_limit_bytes=_vmem_limit_bytes()),
    )(x2d, w, b2d)
    return out[:M, :Dout]


# ----------------------------------------------------------------------------
# Fused attention block kernel: grid = (batch,)
# ----------------------------------------------------------------------------
def _block_kernel(x_ref, wqkv_ref, wo_ref, w1_ref, b1_ref, w2_ref, b2_ref,
                  o_ref, *, num_heads, key_hidden, head_dim):
    """One batch element of a full hidden block, fully fused in VMEM:

        qkv      = x @ [Wq | Wk | Wv]           (single lane-dense MXU matmul)
        per head:  softmax(q_h k_h^T / sqrt(Kh)) @ v
        attn_out = o_all @ Wo                    (single K = H*hd contraction)
        out      = fc2(relu(fc1(attn_out)))

    No intermediate round-trips HBM."""
    H, Kh, hd = num_heads, key_hidden, head_dim
    x = x_ref[0]                                          # [N, D] bf16
    n = x.shape[0]

    # Fused Q/K/V projection for all heads at once (lane-dense output width
    # H*(2*Kh) + H*hd, vs. 3*H narrow per-head matmuls previously).
    qkv = jnp.dot(x, wqkv_ref[...], preferred_element_type=jnp.float32)
    scale = 1.0 / float(np.sqrt(float(Kh)))               # folded into q
    q_all = (qkv[:, : H * Kh] * scale).astype(jnp.bfloat16)
    k_all = qkv[:, H * Kh: 2 * H * Kh].astype(jnp.bfloat16)
    v_all = qkv[:, 2 * H * Kh:].astype(jnp.bfloat16)      # [N, H*hd]

    # Per-head attention (static unroll; H is small).  Scores use a
    # contracting-dim dot_general: q @ k^T without materializing k^T.
    # TODO(synk): for large N convert to a flash-style online softmax over KV
    #             tiles; the dense [N, N] f32 tile is the fastest-growing VMEM
    #             term, especially under v7x's 64 MiB.
    head_col = jax.lax.broadcasted_iota(jnp.int32, (n, H * hd), 1) // hd
    o_all = jnp.zeros((n, H * hd), jnp.float32)
    for h in range(H):
        q = q_all[:, h * Kh:(h + 1) * Kh]
        k = k_all[:, h * Kh:(h + 1) * Kh]
        s = jax.lax.dot_general(q, k, (((1,), (1,)), ((), ())),
                                preferred_element_type=jnp.float32)   # [N, N]
        m = jnp.max(s, axis=-1, keepdims=True)
        p = jnp.exp(s - m)
        denom = jnp.sum(p, axis=-1, keepdims=True)
        attn = (p * pl.reciprocal(denom, approx=True)).astype(jnp.bfloat16)
        # attn_h @ v_all already holds this head's output o_h = attn_h @ v_h in
        # columns [h*hd, (h+1)*hd); a lane-id select keeps exactly those
        # columns (lane-dense PV matmul + VPU select; avoids a minor-dim
        # concatenate).  For large hd, write o_h into a VMEM scratch at
        # 128-aligned offsets instead.
        pv = jnp.dot(attn, v_all, preferred_element_type=jnp.float32)  # [N, H*hd]
        o_all = jnp.where(head_col == h, pv, o_all)

    # Head merge as ONE MXU K-contraction (no per-head accumulator RMW).
    attn_out = jnp.dot(o_all.astype(jnp.bfloat16), wo_ref[...],
                       preferred_element_type=jnp.float32)             # [N, D]

    # MLP: relu(fc1) -> fc2, still in VMEM.
    y = jnp.dot(attn_out.astype(jnp.bfloat16), w1_ref[...],
                preferred_element_type=jnp.float32) + b1_ref[...]
    y = jnp.maximum(y, 0.0)
    z = jnp.dot(y.astype(jnp.bfloat16), w2_ref[...],
                preferred_element_type=jnp.float32) + b2_ref[...]

    # TODO(synk): D=32 < 128 here so this store lowers to masked vst; for real
    #             sizes keep D a multiple of 128 for unmasked lane-dense stores.
    o_ref[0] = z.astype(o_ref.dtype)


def attention_block_pallas(h, w_qkv, w_o, w1, b1, w2, b2, *, num_heads,
                           key_hidden, head_dim):
    B, N, D = h.shape
    qkv_w = w_qkv.shape[1]
    b1_2 = b1.reshape(1, D).astype(jnp.float32)
    b2_2 = b2.reshape(1, D).astype(jnp.float32)

    kern = functools.partial(_block_kernel, num_heads=num_heads,
                             key_hidden=key_hidden, head_dim=head_dim)
    return pl.pallas_call(
        kern,
        grid=(B,),
        in_specs=[
            pl.BlockSpec((1, N, D), lambda b: (b, 0, 0)),
            _resident_spec((D, qkv_w)),
            _resident_spec((num_heads * head_dim, D)),
            _resident_spec((D, D)),
            _resident_spec((1, D)),
            _resident_spec((D, D)),
            _resident_spec((1, D)),
        ],
        out_specs=pl.BlockSpec((1, N, D), lambda b: (b, 0, 0)),
        out_shape=jax.ShapeDtypeStruct((B, N, D), jnp.bfloat16),
        compiler_params=pltpu.CompilerParams(
            # Batch axis is "parallel": v7x's two TensorCores split it.
            # TODO(synk): for B == 1 / large N, add a query-tile "parallel"
            #             axis so both v7x cores stay busy.
            dimension_semantics=("parallel",),
            vmem_limit_bytes=_vmem_limit_bytes()),
    )(h, w_qkv, w_o, w1, b1_2, w2, b2_2)


# ----------------------------------------------------------------------------
# Parameter construction (deterministic, synthetic; weights bf16, biases f32)
# ----------------------------------------------------------------------------
def init_params(key, input_dim, hidden_dim, n_hidden, output_dim, num_heads):
    head_dim = hidden_dim // num_heads
    key_hidden = hidden_dim
    n_blocks = n_hidden - 1

    def nxt(k):
        return jax.random.split(k)

    def wgt(k, shape):
        return (0.1 * jax.random.normal(k, shape, jnp.float32)).astype(jnp.bfloat16)

    def bias(k, shape):
        return 0.1 * jax.random.normal(k, shape, jnp.float32)

    params = {}
    k = key
    k, s = nxt(k); params["w_init"] = wgt(s, (input_dim, hidden_dim))
    k, s = nxt(k); params["b_init"] = bias(s, (hidden_dim,))

    params["blocks"] = []
    for _ in range(n_blocks):
        blk = {}
        k, s = nxt(k); wq = wgt(s, (hidden_dim, num_heads * key_hidden))
        k, s = nxt(k); wk = wgt(s, (hidden_dim, num_heads * key_hidden))
        k, s = nxt(k); wv = wgt(s, (hidden_dim, num_heads * head_dim))
        # Fused lane-dense QKV weight slab; columns are head-major, matching
        # nn.Linear(...).view(..., H, Kh).
        blk["w_qkv"] = jnp.concatenate([wq, wk, wv], axis=1)
        k, s = nxt(k); blk["w_o"] = wgt(s, (num_heads * head_dim, hidden_dim))
        k, s = nxt(k); blk["w1"] = wgt(s, (hidden_dim, hidden_dim))
        k, s = nxt(k); blk["b1"] = bias(s, (hidden_dim,))
        k, s = nxt(k); blk["w2"] = wgt(s, (hidden_dim, hidden_dim))
        k, s = nxt(k); blk["b2"] = bias(s, (hidden_dim,))
        params["blocks"].append(blk)

    k, s = nxt(k); params["w_final"] = wgt(s, (hidden_dim, output_dim))
    k, s = nxt(k); params["b_final"] = bias(s, (output_dim,))
    return params


# ----------------------------------------------------------------------------
# Forward pass (Pallas) + precision-matched pure-JAX reference
# ----------------------------------------------------------------------------
def self_attention_forward_pallas(params, x, batch_size, *, hidden_dim,
                                  output_dim, num_heads):
    B, N, Din = x.shape
    head_dim = hidden_dim // num_heads
    key_hidden = hidden_dim

    h = linear_pallas(x.reshape(B * N, Din), params["w_init"], params["b_init"],
                      relu=True, out_dtype=jnp.bfloat16)
    h = h.reshape(batch_size, -1, hidden_dim)
    n_tok = h.shape[1]

    for blk in params["blocks"]:
        h = attention_block_pallas(
            h, blk["w_qkv"], blk["w_o"], blk["w1"], blk["b1"], blk["w2"],
            blk["b2"], num_heads=num_heads, key_hidden=key_hidden,
            head_dim=head_dim)

    out = linear_pallas(h.reshape(batch_size * n_tok, hidden_dim),
                        params["w_final"], params["b_final"],
                        relu=False, out_dtype=jnp.float32)
    return out.reshape(batch_size, n_tok, output_dim)


def self_attention_forward_ref(params, x, batch_size, *, hidden_dim,
                               output_dim, num_heads):
    """Pure-JAX reference mirroring the kernel's bf16-operand / f32-accum math
    (validates self-consistency of the fused kernels, not f32 PyTorch)."""
    B, N, Din = x.shape
    H = num_heads
    hd = hidden_dim // num_heads
    Kh = hidden_dim
    scale = 1.0 / float(np.sqrt(float(Kh)))

    def bdot(a, b):
        return jnp.dot(a.astype(jnp.bfloat16), b.astype(jnp.bfloat16),
                       preferred_element_type=jnp.float32)

    h = jax.nn.relu(bdot(x.reshape(B * N, Din), params["w_init"])
                    + params["b_init"]).astype(jnp.bfloat16)
    h = h.reshape(batch_size, -1, hidden_dim)
    n_tok = h.shape[1]

    for blk in params["blocks"]:
        wq = blk["w_qkv"][:, : H * Kh]
        wk = blk["w_qkv"][:, H * Kh: 2 * H * Kh]
        wv = blk["w_qkv"][:, 2 * H * Kh:]
        h2d = h.reshape(batch_size * n_tok, hidden_dim)
        q = bdot(h2d, wq).reshape(batch_size, n_tok, H, Kh) * scale
        k = bdot(h2d, wk).reshape(batch_size, n_tok, H, Kh)
        v = bdot(h2d, wv).reshape(batch_size, n_tok, H, hd)
        q = jnp.transpose(q, (0, 2, 1, 3))
        k = jnp.transpose(k, (0, 2, 1, 3))
        v = jnp.transpose(v, (0, 2, 1, 3))
        s = jnp.einsum("bhqd,bhkd->bhqk", q.astype(jnp.bfloat16),
                       k.astype(jnp.bfloat16), preferred_element_type=jnp.float32)
        attn = jax.nn.softmax(s, axis=-1)
        o = jnp.einsum("bhqk,bhkd->bhqd", attn.astype(jnp.bfloat16),
                       v.astype(jnp.bfloat16), preferred_element_type=jnp.float32)
        o = jnp.transpose(o, (0, 2, 1, 3)).reshape(batch_size * n_tok, H * hd)
        a_out = bdot(o, blk["w_o"])
        y = jax.nn.relu(bdot(a_out, blk["w1"]) + blk["b1"])
        z = bdot(y, blk["w2"]) + blk["b2"]
        h = z.astype(jnp.bfloat16).reshape(batch_size, n_tok, hidden_dim)

    out = bdot(h.reshape(batch_size * n_tok, hidden_dim), params["w_final"]) \
        + params["b_final"]
    return out.reshape(batch_size, n_tok, output_dim)


# ----------------------------------------------------------------------------
if __name__ == "__main__":
    # Small configuration consistent with the module.
    input_dim, hidden_dim, n_hidden, output_dim, num_heads = 4, 32, 3, 8, 4
    B, N = 2, 8

    key = jax.random.PRNGKey(0)
    pkey, xkey = jax.random.split(key)
    params = init_params(pkey, input_dim, hidden_dim, n_hidden, output_dim,
                         num_heads)
    x = jax.random.normal(xkey, (B, N, input_dim), jnp.float32)

    out = self_attention_forward_pallas(
        params, x, B, hidden_dim=hidden_dim, output_dim=output_dim,
        num_heads=num_heads)
    out = jax.block_until_ready(out)

    ref = self_attention_forward_ref(
        params, x, B, hidden_dim=hidden_dim, output_dim=output_dim,
        num_heads=num_heads)
    np.testing.assert_allclose(np.asarray(out, dtype=np.float32),
                               np.asarray(ref, dtype=np.float32),
                               rtol=2e-2, atol=2e-3)
    assert out.shape == (B, N, output_dim)
    print("KERNEL_OK")
</pallas_src>

<mosaic_0001>
module attributes {stable_mosaic.version = 11 : i64} {
  func.func @_linear_kernel(%arg0: i32, %arg1: i32, %arg2: i32, %arg3: memref<16x128xbf16, #tpu.memory_space<vmem>>, %arg4: memref<128x128xbf16, #tpu.memory_space<vmem>>, %arg5: memref<1x128xf32, #tpu.memory_space<vmem>>, %arg6: memref<16x128xbf16, #tpu.memory_space<vmem>>, %arg7: memref<16x128xf32, #tpu.memory_space<vmem>>) attributes {dimension_semantics = [#tpu.dimension_semantics<parallel>, #tpu.dimension_semantics<parallel>, #tpu.dimension_semantics<arbitrary>], iteration_bounds = array<i64: 1, 1, 1>, scalar_prefetch = 0 : i64, scratch_operands = 1 : i64, tpu.core_type = #tpu.core_type<tc>, window_params = [{transform_indices = @transform_0, window_bounds = array<i64: 16, 128>}, {transform_indices = @transform_1, window_bounds = array<i64: 128, 128>}, {transform_indices = @transform_2, window_bounds = array<i64: 1, 128>}, {transform_indices = @transform_3, window_bounds = array<i64: 16, 128>}]} {
    %c0_i32 = arith.constant 0 : i32
    %0 = arith.cmpi eq, %arg2, %c0_i32 : i32
    %1 = arith.extui %0 : i1 to i32
    %c0_i32_0 = arith.constant 0 : i32
    %2 = arith.cmpi ne, %1, %c0_i32_0 : i32
    scf.if %2 {
      %cst_10 = arith.constant 0.000000e+00 : f32
      %12 = vector.broadcast %cst_10 : f32 to vector<16x128xf32>
      %c0_11 = arith.constant 0 : index
      %c0_12 = arith.constant 0 : index
      %13 = vector.load %arg7[%c0_11, %c0_12] : memref<16x128xf32, #tpu.memory_space<vmem>>, vector<16x128xf32>
      tpu.vector_store %arg7[%c0_11, %c0_12], %12 {strides = array<i32>} : memref<16x128xf32, #tpu.memory_space<vmem>>, vector<16x128xf32>,
    } else {
    }
    %c0 = arith.constant 0 : index
    %c0_1 = arith.constant 0 : index
    %3 = vector.load %arg7[%c0, %c0_1] : memref<16x128xf32, #tpu.memory_space<vmem>>, vector<16x128xf32>
    %c0_2 = arith.constant 0 : index
    %c0_3 = arith.constant 0 : index
    %4 = vector.load %arg3[%c0_2, %c0_3] : memref<16x128xbf16, #tpu.memory_space<vmem>>, vector<16x128xbf16>
    %c0_4 = arith.constant 0 : index
    %c0_5 = arith.constant 0 : index
    %5 = vector.load %arg4[%c0_4, %c0_5] : memref<128x128xbf16, #tpu.memory_space<vmem>>, vector<128x128xbf16>
    %cst = arith.constant dense<0.000000e+00> : vector<16x128xf32>
    %6 = tpu.matmul %4, %5, %cst {dimension_numbers = #tpu.dot_dimension_numbers<[1], [0], [0], [1], [0, 0, 1, 1], [], []>} : vector<16x128xbf16>, vector<128x128xbf16>, vector<16x128xf32> -> vector<16x128xf32>
    %7 = arith.addf %3, %6 : vector<16x128xf32>
    %c0_6 = arith.constant 0 : index
    %c0_7 = arith.constant 0 : index
    %8 = vector.load %arg7[%c0_6, %c0_7] : memref<16x128xf32, #tpu.memory_space<vmem>>, vector<16x128xf32>
    tpu.vector_store %arg7[%c0_6, %c0_7], %7 {strides = array<i32>} : memref<16x128xf32, #tpu.memory_space<vmem>>, vector<16x128xf32>,
    %c0_i32_8 = arith.constant 0 : i32
    %9 = arith.cmpi eq, %arg2, %c0_i32_8 : i32
    %10 = arith.extui %9 : i1 to i32
    %c0_i32_9 = arith.constant 0 : i32
    %11 = arith.cmpi ne, %10, %c0_i32_9 : i32
    scf.if %11 {
      %c0_10 = arith.constant 0 : index
      %c0_11 = arith.constant 0 : index
      %12 = vector.load %arg7[%c0_10, %c0_11] : memref<16x128xf32, #tpu.memory_space<vmem>>, vector<16x128xf32>
      %c0_12 = arith.constant 0 : index
      %c0_13 = arith.constant 0 : index
      %13 = vector.load %arg5[%c0_12, %c0_13] : memref<1x128xf32, #tpu.memory_space<vmem>>, vector<1x128xf32>
      %14 = vector.broadcast %13 : vector<1x128xf32> to vector<16x128xf32>
      %15 = arith.addf %12, %14 : vector<16x128xf32>
      %cst_14 = arith.constant 0.000000e+00 : f32
      %16 = vector.broadcast %cst_14 : f32 to vector<16x128xf32>
      %17 = arith.maximumf %15, %16 : vector<16x128xf32>
      %18 = arith.truncf %17 : vector<16x128xf32> to vector<16x128xbf16>
      %c0_15 = arith.constant 0 : index
      %c0_16 = arith.constant 0 : index
      %19 = vector.load %arg6[%c0_15, %c0_16] : memref<16x128xbf16, #tpu.memory_space<vmem>>, vector<16x128xbf16>
      tpu.vector_store %arg6[%c0_15, %c0_16], %18 {strides = array<i32>} : memref<16x128xbf16, #tpu.memory_space<vmem>>, vector<16x128xbf16>,
    } else {
    }
    return
  }
  func.func @transform_0(%arg0: i32, %arg1: i32, %arg2: i32) -> (i32, i32) {
    %c0_i32 = arith.constant 0 : i32
    return %arg0, %arg2 : i32, i32
  }
  func.func @transform_1(%arg0: i32, %arg1: i32, %arg2: i32) -> (i32, i32) {
    %c0_i32 = arith.constant 0 : i32
    return %arg2, %arg1 : i32, i32
  }
  func.func @transform_2(%arg0: i32, %arg1: i32, %arg2: i32) -> (i32, i32) {
    %c0_i32 = arith.constant 0 : i32
    %c0_i32_0 = arith.constant 0 : i32
    return %c0_i32, %arg1 : i32, i32
  }
  func.func @transform_3(%arg0: i32, %arg1: i32, %arg2: i32) -> (i32, i32) {
    %c0_i32 = arith.constant 0 : i32
    return %arg0, %arg1 : i32, i32
  }
}

</mosaic_0001>

<llo_original>
// kernel: tpu_custom_call.1
$region0: #{tpu_custom_call.1}
  #allocation0 [shape = 'u32[]', space=smem, size = 0x4, offset = 0x4, fixed_abs, tag = 'smem constant byte address 0x4 - core index']
  #allocation1 [shape = 'u32[144,128]{1,0:T(1,128)}', space=vmem, size = 0x12000, scoped, tag = 'internal scratch']
  #allocation2 [shape = 'f32[16,128]{1,0:T(8,128)}', space=vmem, size = 0x2000, scoped, tag = 'scratch operand']
  %s0 = inlined_call_operand.hbm [shape: bf16[16,128], index: 0, kind: input, shape index: {}]
  %s1 = inlined_call_operand.hbm [shape: bf16[128,128], index: 1, kind: input, shape index: {}]
  %s2 = inlined_call_operand.vmem [shape: f32[1,128], index: 2, kind: input, shape index: {}]
  %s3 = inlined_call_operand.hbm [shape: bf16[16,128], index: 3, kind: output, shape index: {}]
  %s4 = sld [smem:[#allocation0]]
  $region38: #{tpu_custom_call.1} parent=0
    _
  %s6 = ssub.s32 1, %s4
  %s7 = scalar_select 0, %s6, %s4
  $region1: #{tpu_custom_call.1} parent=0
    #allocation3 [shape = 'u8[4096]{0}', space=vmem, size = 0x1000, scoped, tag = 'input window, operand 0, single buffered']
    #allocation4 [shape = 's32[1]{0}', space=sflag, size = 0x4, scoped, tag = 'scoped memory for tpu_custom_call.1']
    #allocation5 [shape = 's32[1]{0}', space=sflag, size = 0x4, scoped, tag = 'scoped memory for tpu_custom_call.1']
    #allocation6 [shape = 'u8[32768]{0}', space=vmem, size = 0x8000, scoped, tag = 'input window, operand 1, single buffered']
    #allocation7 [shape = 's32[1]{0}', space=sflag, size = 0x4, scoped, tag = 'scoped memory for tpu_custom_call.1']
    #allocation8 [shape = 'u8[4096]{0}', space=vmem, size = 0x1000, scoped, tag = 'output window, operand 0, single buffered']
    %8 = vsyncpa [#allocation4], 0
    %9 = vsyncpa [#allocation7], 0
    %10 = vsyncpa [#allocation5], 0
    // Predicated region
    $region2: #{tpu_custom_call.1} parent=1 // pred_check
      _
    $region3: #{tpu_custom_call.1} parent=1 // pred_check_branch
      %12 = sbr.rel (0) target = $region5
    $region4: #{tpu_custom_call.1} parent=1 // pred_region
      %s14 = ssub.s32 128, 128
      %15 = vsyncadd [#allocation4], %s14
      %s16 = sshll.u32 [#allocation3], 4
      %s17 = int_to_ptr.vmem [resolvable:$true] %s16
      %22 = dma.hbm_to_vmem [thread:$0]  %s0, 128, %s17, [#allocation4], 64, 64, 4
    $region5: #{tpu_custom_call.1} parent=1 // pred_fallthru
      _
    // Predicated region
    $region6: #{tpu_custom_call.1} parent=1 // pred_check
      _
    $region7: #{tpu_custom_call.1} parent=1 // pred_check_branch
      %24 = sbr.rel (0) target = $region9
    $region8: #{tpu_custom_call.1} parent=1 // pred_region
      %s26 = ssub.s32 1024, 1024
      %27 = vsyncadd [#allocation7], %s26
      %s28 = sshll.u32 [#allocation6], 4
      %s29 = int_to_ptr.vmem [resolvable:$true] %s28
      %34 = dma.hbm_to_vmem [thread:$0]  %s1, 1024, %s29, [#allocation7], 64, 64, 4
    $region9: #{tpu_custom_call.1} parent=1 // pred_fallthru
      _
    // Predicated region
    $region10: #{tpu_custom_call.1} parent=1 // pred_check
      _
    $region11: #{tpu_custom_call.1} parent=1 // pred_check_branch
      %36 = sbr.rel (0) target = $region13
    $region12: #{tpu_custom_call.1} parent=1 // pred_region
      _
    $region13: #{tpu_custom_call.1} parent=1 // pred_fallthru
      _
    // Predicated region
    $region14: #{tpu_custom_call.1} parent=1 // pred_check
      _
    $region15: #{tpu_custom_call.1} parent=1 // pred_check_branch
      %38 = sbr.rel (0) target = $region17
    $region16: #{tpu_custom_call.1} parent=1 // pred_region
      %39 = dma.done [#allocation4], 128
    $region17: #{tpu_custom_call.1} parent=1 // pred_fallthru
      _
    // Predicated region
    $region18: #{tpu_custom_call.1} parent=1 // pred_check
      _
    $region19: #{tpu_custom_call.1} parent=1 // pred_check_branch
      %41 = sbr.rel (0) target = $region21
    $region20: #{tpu_custom_call.1} parent=1 // pred_region
      %42 = dma.done [#allocation7], 1024
    $region21: #{tpu_custom_call.1} parent=1 // pred_fallthru
      _
    %p44 = scmp.eq.s32.totalorder 0, 0
    // Predicated region
    $region22: #{tpu_custom_call.1} parent=1 // pred_check
      %p45 = pneg %p44
    $region23: #{tpu_custom_call.1} parent=1 // pred_check_branch
      %47 = sbr.rel (%p45) target = $region25
    $region24: #{tpu_custom_call.1} parent=1 // pred_region
      %48 = vst [vmem:[#allocation2] sm:$0xff] 0.0
      %49 = vst [vmem:[#allocation2 + $0x8] sm:$0xff] 0.0
    $region25: #{tpu_custom_call.1} parent=1 // pred_fallthru
      _
    %v50 = vld [vmem:[#allocation2] sm:$0xff]
    %v51 = vld [vmem:[#allocation2 + $0x8] sm:$0xff]
    %v52 = vld [vmem:[#allocation3] sm:$0xf]
    %v53 = vld [vmem:[#allocation3 + $0x4] sm:$0xf]
    %v54 = vld [vmem:[#allocation6] sm:$0xf]
    %v55 = vld [vmem:[#allocation6 + $0x4] sm:$0xf]
    %v56 = vld [vmem:[#allocation6 + $0x8] sm:$0xf]
    %v57 = vld [vmem:[#allocation6 + $0xc] sm:$0xf]
    %v58 = vld [vmem:[#allocation6 + $0x10] sm:$0xf]
    %v59 = vld [vmem:[#allocation6 + $0x14] sm:$0xf]
    %v60 = vld [vmem:[#allocation6 + $0x18] sm:$0xf]
    %v61 = vld [vmem:[#allocation6 + $0x1c] sm:$0xf]
    %v62 = vld [vmem:[#allocation6 + $0x20] sm:$0xf]
    %v63 = vld [vmem:[#allocation6 + $0x24] sm:$0xf]
    %v64 = vld [vmem:[#allocation6 + $0x28] sm:$0xf]
    %v65 = vld [vmem:[#allocation6 + $0x2c] sm:$0xf]
    %v66 = vld [vmem:[#allocation6 + $0x30] sm:$0xf]
    %v67 = vld [vmem:[#allocation6 + $0x34] sm:$0xf]
    %v68 = vld [vmem:[#allocation6 + $0x38] sm:$0xf]
    %v69 = vld [vmem:[#allocation6 + $0x3c] sm:$0xf]
    %v72 = vunpack.c.l.b16 %v52
    %v73 = vunpack.c.l.b16 %v53
    %v74 = vpack.c.b16 %v73, %v72
    %v92 = vunpack.c.l.b16 %v54
    %v93 = vunpack.c.l.b16 %v55
    %v94 = vunpack.c.l.b16 %v56
    %v95 = vunpack.c.l.b16 %v57
    %v96 = vunpack.c.l.b16 %v58
    %v97 = vunpack.c.l.b16 %v59
    %v98 = vunpack.c.l.b16 %v60
    %v99 = vunpack.c.l.b16 %v61
    %v100 = vunpack.c.l.b16 %v62
    %v101 = vunpack.c.l.b16 %v63
    %v102 = vunpack.c.l.b16 %v64
    %v103 = vunpack.c.l.b16 %v65
    %v104 = vunpack.c.l.b16 %v66
    %v105 = vunpack.c.l.b16 %v67
    %v106 = vunpack.c.l.b16 %v68
    %v107 = vunpack.c.l.b16 %v69
    %v108 = vpack.c.b16 %v93, %v92
    %v109 = vpack.c.b16 %v95, %v94
    %v110 = vpack.c.b16 %v97, %v96
    %v111 = vpack.c.b16 %v99, %v98
    %v112 = vpack.c.b16 %v101, %v100
    %v113 = vpack.c.b16 %v103, %v102
    %v114 = vpack.c.b16 %v105, %v104
    %v115 = vpack.c.b16 %v107, %v106
    %124 = vmatprep.subr.bf16.mxu0 0
    %125 = vmatpush1.bf16.msra.mxu0 %v115
    %126 = vmatprep.subr.bf16.mxu0 0
    %127 = vmatpush1.bf16.msra.mxu0 %v114
    %128 = vmatprep.subr.bf16.mxu0 0
    %129 = vmatpush1.bf16.msra.mxu0 %v113
    %130 = vmatprep.subr.bf16.mxu0 0
    %131 = vmatpush1.bf16.msra.mxu0 %v112
    %132 = vmatprep.subr.bf16.mxu0 0
    %133 = vmatpush1.bf16.msra.mxu0 %v111
    %134 = vmatprep.subr.bf16.mxu0 0
    %135 = vmatpush1.bf16.msra.mxu0 %v110
    %136 = vmatprep.subr.bf16.mxu0 0
    %137 = vmatpush1.bf16.msra.mxu0 %v109
    %138 = vmatprep.subr.bf16.mxu0 0
    %139 = vmatpush1.bf16.msra.mxu0 %v108
    %140 = vmatprep.subr.bf16.mxu0 0
    %141 = vmatpush2.bf16.msra.mxu0 0
    %142 = vmatprep.subr.bf16.mxu0 0
    %143 = vmatpush2.bf16.msra.mxu0 0
    %144 = vmatprep.subr.bf16.mxu0 0
    %145 = vmatpush2.bf16.msra.mxu0 0
    %146 = vmatprep.subr.bf16.mxu0 0
    %147 = vmatpush2.bf16.msra.mxu0 0
    %148 = vmatprep.subr.bf16.mxu0 0
    %149 = vmatpush2.bf16.msra.mxu0 0
    %150 = vmatprep.subr.bf16.mxu0 0
    %151 = vmatpush2.bf16.msra.mxu0 0
    %152 = vmatprep.subr.bf16.mxu0 0
    %153 = vmatpush2.bf16.msra.mxu0 0
    %154 = vmatprep.subr.bf16.mxu0 0
    %155 = vmatpush2.bf16.msra.mxu0 0
    %156 = vmatprep.mubr.bf16.mxu0 0
    %157 = vmatmul.mubr.bf16.gmra.mxu0 %v74
    %v158 = vpop.f32.mrf.mxu0
    %v159 = vadd.f32 0.0, %v158
    %v160 = vpop.f32.mrf.mxu0
    %v161 = vpop.f32.mrf.mxu0
    %v162 = vadd.f32 0.0, %v161
    %v163 = vpop.f32.mrf.mxu0
    %164 = vdwg.mxu0
    %v165 = vadd.f32 %v50, %v159
    %v166 = vadd.f32 %v51, %v162
    %167 = vst [vmem:[#allocation2] sm:$0xff] %v165
    %168 = vst [vmem:[#allocation2 + $0x8] sm:$0xff] %v166
    // Predicated region
    $region26: #{tpu_custom_call.1} parent=1 // pred_check
      %p169 = pneg %p44
    $region27: #{tpu_custom_call.1} parent=1 // pred_check_branch
      %171 = sbr.rel (%p169) target = $region29
    $region28: #{tpu_custom_call.1} parent=1 // pred_region
      %v172 = vld [vmem:[#allocation2] sm:$0xff]
      %v173 = vld [vmem:[#allocation2 + $0x8] sm:$0xff]
      %v174 = vld [vmem:[%s2] sm:$0x1]
      %v176 = vlaneseq
      %v177 = vshrl.u32 %v176, 7
      %v178 = vsub.s32 0, %v177
      %v179 = vrot.slane %v174, %v178
      %v181 = vadd.f32 %v172, %v179
      %v182 = vadd.f32 %v173, %v179
      %v183 = vmax.f32 %v181, 0.0
      %v184 = vmax.f32 %v182, 0.0
      %v185 = vpack.c.bf16 %v184, %v183
      %v187 = vunpack.c.l.b16 %v185
      %v188 = vunpack.c.h.b16 %v185
      %v189 = vpack.c.b16 %v187, %v187
      %v190 = vpack.c.b16 %v188, %v188
      %193 = vst [vmem:[#allocation8] sm:$0xf] %v189
      %194 = vst [vmem:[#allocation8 + $0x4] sm:$0xf] %v190
    $region29: #{tpu_custom_call.1} parent=1 // pred_fallthru
      _
    // Predicated region
    $region30: #{tpu_custom_call.1} parent=1 // pred_check
      _
    $region31: #{tpu_custom_call.1} parent=1 // pred_check_branch
      %196 = sbr.rel (0) target = $region33
    $region32: #{tpu_custom_call.1} parent=1 // pred_region
      %s198 = ssub.s32 128, 128
      %199 = vsyncadd [#allocation5], %s198
      %s200 = sshll.u32 [#allocation8], 4
      %s201 = int_to_ptr.vmem [resolvable:$true] %s200
      %206 = dma.vmem_to_hbm [thread:$0]  %s201, 128, %s3, [#allocation5], 64, 64, 4
    $region33: #{tpu_custom_call.1} parent=1 // pred_fallthru
      _
    // Predicated region
    $region34: #{tpu_custom_call.1} parent=1 // pred_check
      _
    $region35: #{tpu_custom_call.1} parent=1 // pred_check_branch
      %208 = sbr.rel (0) target = $region37
    $region36: #{tpu_custom_call.1} parent=1 // pred_region
      %209 = dma.done [#allocation5], 128
    $region37: #{tpu_custom_call.1} parent=1 // pred_fallthru
      _
    %210 = vsyncpa [#allocation4], 1
    %211 = vsyncpa [#allocation7], 1
    %212 = vsyncpa [#allocation5], 1

</llo_original>
